<compile_context>
chip_gen: v5e
topology: v5e:2x2
jax: 0.10.0
libtpu: 0.0.40
codegen_flags: <defaults>
</compile_context>

<pallas_src>
import functools

import jax
import jax.numpy as jnp
from jax import lax
from jax.experimental import pallas as pl
from jax.experimental.pallas import tpu as pltpu


def _round_up(x, m):
    return ((x + m - 1) // m) * m


# ---------------------------------------------------------------------------
# Small-channel (<=16) path: 1x1 convs as scalar-broadcast FMAs on the VPU.
# ---------------------------------------------------------------------------
def _gate_kernel_vpu(x_ref, g_ref, w1x_ref, w1g_ref, w2_ref, o_ref,
                     *, cx, cg, co, slab_rows):
    """x_ref/g_ref/o_ref: (BT, C, R, 128) VMEM tiles; weights (Co, Cin) in SMEM."""
    rows = x_ref.shape[2]
    n_slabs = rows // slab_rows

    def slab_body(s, carry):
        r0 = pl.multiple_of(s * slab_rows, slab_rows)
        rsl = pl.ds(r0, slab_rows)

        # Dense per-channel (BT, slab_rows, 128) blocks -> full vreg occupancy.
        xs = [x_ref[:, c, rsl, :] for c in range(cx)]
        gs = [g_ref[:, c, rsl, :] for c in range(cg)]

        # h = ReLU(W1 @ concat(x, g)) == ReLU(W1x @ x + W1g @ g), per out ch.
        h = []
        for o in range(co):
            acc = w1x_ref[o, 0] * xs[0]
            for c in range(1, cx):
                acc = acc + w1x_ref[o, c] * xs[c]
            for c in range(cg):
                acc = acc + w1g_ref[o, c] * gs[c]
            h.append(jnp.maximum(acc, 0.0))

        # attn = sigmoid(W2 @ h);  out = x * attn  (per-channel dense stores).
        for o in range(co):
            a = w2_ref[o, 0] * h[0]
            for c in range(1, co):
                a = a + w2_ref[o, c] * h[c]
            a = jax.nn.sigmoid(a)
            o_ref[:, o, rsl, :] = (xs[o] * a).astype(o_ref.dtype)
        return carry

    lax.fori_loop(0, n_slabs, slab_body, 0, unroll=(n_slabs <= 8))


# ---------------------------------------------------------------------------
# Large-channel path: 1x1 convs on the MXU, fused per lane-chunk (no spills).
# ---------------------------------------------------------------------------
def _gate_kernel_mxu(x_ref, g_ref, w1x_ref, w1g_ref, w2_ref, o_ref, *, lane_chunk):
    """x_ref/g_ref/o_ref: (1, C, TM) VMEM tiles; weights (Co, Cin) in VMEM."""
    tm = x_ref.shape[-1]
    n_chunks = tm // lane_chunk
    w1x = w1x_ref[...]
    w1g = w1g_ref[...]
    w2 = w2_ref[...]

    def chunk_body(s, carry):
        l0 = pl.multiple_of(s * lane_chunk, lane_chunk)
        lsl = pl.ds(l0, lane_chunk)
        xs = x_ref[0, :, lsl]                                   # (Cx, chunk)
        gs = g_ref[0, :, lsl]                                   # (Cg, chunk)
        h = jnp.dot(w1x, xs, preferred_element_type=jnp.float32)
        h = h + jnp.dot(w1g, gs, preferred_element_type=jnp.float32)
        h = jnp.maximum(h, 0.0).astype(w2.dtype)
        a = jnp.dot(w2, h, preferred_element_type=jnp.float32)
        a = jax.nn.sigmoid(a)
        o_ref[0, :, lsl] = (xs.astype(jnp.float32) * a).astype(o_ref.dtype)
        return carry

    lax.fori_loop(0, n_chunks, chunk_body, 0, unroll=(n_chunks <= 4))


@functools.partial(jax.jit, static_argnames=("tile_m",))
def attention_gate(x, g, w_x_g, w_attn, tile_m=32768):
    """AttentionGate forward (concat=True).

    x      : (N, Cx, H, W)        (NCHW, as in PyTorch; f32 or bf16)
    g      : (N, Cg, H, W)
    w_x_g  : (Co, Cx+Cg, 1, 1)    conv weight (no bias)
    w_attn : (Co, Co, 1, 1)       conv weight (no bias)
    returns: (N, Cx, H, W)        -- requires Co == Cx (elementwise x * attn)
    """
    n, cx, h, w = x.shape
    _, cg, _, _ = g.shape
    co = w_x_g.shape[0]
    assert co == cx, "out_ch must equal in_ch_x for x * attn to broadcast"

    hw = h * w
    hw_pad = _round_up(hw, 128)
    m = hw_pad // 128

    # 1x1 conv weights as (Co, Cin) matrices; split the concat contraction.
    w1 = w_x_g[:, :, 0, 0]
    w2 = w_attn[:, :, 0, 0]
    w1x = w1[:, :cx]
    w1g = w1[:, cx:]

    # Flatten spatial; pad once to a multiple of 128 (no HBM transposes).
    xf = x.reshape(n, cx, hw)
    gf = g.reshape(n, cg, hw)
    if hw_pad != hw:
        xf = jnp.pad(xf, ((0, 0), (0, 0), (0, hw_pad - hw)))
        gf = jnp.pad(gf, ((0, 0), (0, 0), (0, hw_pad - hw)))

    small = max(cx, cg, co) <= 16

    if small:
        # (N, C, m, 128): channels stay major, spatial dense on (sublane, lane).
        x4 = xf.reshape(n, cx, m, 128)
        g4 = gf.reshape(n, cg, m, 128)

        rows_target = max(32, (max(tile_m, 4096) // 128 // 32) * 32)
        vreg_budget = 192 * 1024                       # ~48 of 64 vregs (f32)
        per_row = (cx + cg + co) * 128 * 4

        if m >= rows_target:
            tm_rows, b_tile = rows_target, 1
        else:
            tm_rows = m
            b_tile = int(max(1, min(n, vreg_budget // max(per_row * m, 1))))

        # In-kernel row-slab size: biggest of {32,16,8} that divides the block
        # rows and keeps every live channel slab inside the vreg file.
        slab_rows = tm_rows
        if b_tile == 1:
            for cand in (32, 16, 8):
                if tm_rows % cand == 0 and cand * per_row <= vreg_budget:
                    slab_rows = cand
                    break

        grid = (pl.cdiv(n, b_tile), pl.cdiv(m, tm_rows))
        kernel = functools.partial(_gate_kernel_vpu, cx=cx, cg=cg, co=co,
                                   slab_rows=slab_rows)

        in_specs = [
            pl.BlockSpec((b_tile, cx, tm_rows, 128), lambda i, j: (i, 0, j, 0)),
            pl.BlockSpec((b_tile, cg, tm_rows, 128), lambda i, j: (i, 0, j, 0)),
            pl.BlockSpec(memory_space=pltpu.MemorySpace.SMEM),
            pl.BlockSpec(memory_space=pltpu.MemorySpace.SMEM),
            pl.BlockSpec(memory_space=pltpu.MemorySpace.SMEM),
        ]
        out_spec = pl.BlockSpec((b_tile, co, tm_rows, 128),
                                lambda i, j: (i, 0, j, 0))

        out4 = pl.pallas_call(
            kernel,
            out_shape=jax.ShapeDtypeStruct((n, co, m, 128), x.dtype),
            grid_spec=pltpu.PrefetchScalarGridSpec(
                num_scalar_prefetch=0,
                grid=grid,
                in_specs=in_specs,
                out_specs=out_spec,
            ),
            compiler_params=pltpu.CompilerParams(
                dimension_semantics=("parallel", "parallel"),
            ),
        )(x4, g4,
          w1x.astype(jnp.float32), w1g.astype(jnp.float32),
          w2.astype(jnp.float32))
        out_flat = out4.reshape(n, co, hw_pad)
    else:
        # Dense channels: weights resident in VMEM, convs on the MXU. bf16
        # operands when the inputs are bf16 (f32 accumulation either way).
        w_dtype = jnp.bfloat16 if x.dtype == jnp.bfloat16 else jnp.float32
        bpe = x.dtype.itemsize
        # Keep double-buffered in/out blocks well under v7x's 32 MiB scoped
        # VMEM default: 2 * (cx + cg + co) * tile * bpe <= ~16 MiB.
        budget = 16 * 1024 * 1024
        tile = budget // (2 * (cx + cg + co) * bpe)
        tile = max(512, (tile // 512) * 512)
        if tile >= hw_pad:
            tile = hw_pad
        lane_chunk = 512 if tile % 512 == 0 else 128

        grid = (n, pl.cdiv(hw_pad, tile))
        kernel = functools.partial(_gate_kernel_mxu, lane_chunk=lane_chunk)
        in_specs = [
            pl.BlockSpec((1, cx, tile), lambda i, j: (i, 0, j)),
            pl.BlockSpec((1, cg, tile), lambda i, j: (i, 0, j)),
            pl.BlockSpec((co, cx), lambda i, j: (0, 0)),
            pl.BlockSpec((co, cg), lambda i, j: (0, 0)),
            pl.BlockSpec((co, co), lambda i, j: (0, 0)),
        ]
        out_spec = pl.BlockSpec((1, co, tile), lambda i, j: (i, 0, j))

        out_flat = pl.pallas_call(
            kernel,
            out_shape=jax.ShapeDtypeStruct((n, co, hw_pad), x.dtype),
            grid_spec=pltpu.PrefetchScalarGridSpec(
                num_scalar_prefetch=0,
                grid=grid,
                in_specs=in_specs,
                out_specs=out_spec,
            ),
            compiler_params=pltpu.CompilerParams(
                dimension_semantics=("parallel", "parallel"),
            ),
        )(xf, gf, w1x.astype(w_dtype), w1g.astype(w_dtype), w2.astype(w_dtype))

    if hw_pad != hw:
        out_flat = out_flat[:, :, :hw]
    return out_flat.reshape(n, co, h, w)


def attention_gate_ref(x, g, w_x_g, w_attn):
    """Pure-JAX reference mirroring the PyTorch forward (concat=True)."""
    xg = jnp.concatenate([x, g], axis=1)                      # (N, Cx+Cg, H, W)
    h = jnp.einsum("nchw,oc->nohw", xg, w_x_g[:, :, 0, 0])    # 1x1 conv, no bias
    h = jnp.maximum(h, 0.0)
    a = jnp.einsum("nchw,oc->nohw", h, w_attn[:, :, 0, 0])
    a = jax.nn.sigmoid(a)
    return x * a


if __name__ == "__main__":
    # Small shapes: batch=2, in_ch_x=4, in_ch_g=4, out_ch=4, spatial=16x16.
    N, CX, CG, CO, H, W = 2, 4, 4, 4, 16, 16

    key = jax.random.PRNGKey(0)
    kx, kg, kw1, kw2 = jax.random.split(key, 4)

    x = jax.random.normal(kx, (N, CX, H, W), dtype=jnp.float32)
    g = jax.random.normal(kg, (N, CG, H, W), dtype=jnp.float32)

    # Deterministic synthetic 1x1 conv weights (kaiming-ish scale), bias=False.
    w_x_g = jax.random.normal(kw1, (CO, CX + CG, 1, 1), dtype=jnp.float32) * (
        2.0 / (CX + CG)) ** 0.5
    w_attn = jax.random.normal(kw2, (CO, CO, 1, 1), dtype=jnp.float32) * (
        2.0 / CO) ** 0.5

    out = attention_gate(x, g, w_x_g, w_attn)
    out = jax.block_until_ready(out)

    ref = attention_gate_ref(x, g, w_x_g, w_attn)
    assert out.shape == (N, CX, H, W)
    assert jnp.allclose(out, ref, atol=1e-5, rtol=1e-5), "mismatch vs reference"

    print("KERNEL_OK")
</pallas_src>

<mosaic_0001>
module attributes {stable_mosaic.version = 11 : i64} {
  func.func @_gate_kernel_vpu(%arg0: i32, %arg1: i32, %arg2: memref<2x4x2x128xf32, #tpu.memory_space<vmem>>, %arg3: memref<2x4x2x128xf32, #tpu.memory_space<vmem>>, %arg4: memref<4x4xf32, #tpu.memory_space<smem>>, %arg5: memref<4x4xf32, #tpu.memory_space<smem>>, %arg6: memref<4x4xf32, #tpu.memory_space<smem>>, %arg7: memref<2x4x2x128xf32, #tpu.memory_space<vmem>>) attributes {dimension_semantics = [#tpu.dimension_semantics<parallel>, #tpu.dimension_semantics<parallel>], iteration_bounds = array<i64: 1, 1>, scalar_prefetch = 0 : i64, scratch_operands = 0 : i64, tpu.core_type = #tpu.core_type<tc>, window_params = [{transform_indices = @transform_0, window_bounds = array<i64: 2, 4, 2, 128>}, {transform_indices = @transform_1, window_bounds = array<i64: 2, 4, 2, 128>}, {transform_indices = @transform_2, window_bounds = array<i64: 4, 4>}, {transform_indices = @transform_3, window_bounds = array<i64: 4, 4>}, {transform_indices = @transform_4, window_bounds = array<i64: 4, 4>}, {transform_indices = @transform_5, window_bounds = array<i64: 2, 4, 2, 128>}]} {
    %c0_i32 = arith.constant 0 : i32
    %c2_i32 = arith.constant 2 : i32
    %0 = arith.muli %c0_i32, %c2_i32 : i32
    %1 = tpu.assume_multiple %0, 2 : i32
    %c0 = arith.constant 0 : index
    %c0_0 = arith.constant 0 : index
    %2 = arith.index_cast %1 : i32 to index
    %c0_1 = arith.constant 0 : index
    %3 = vector.load %arg2[%c0, %c0_0, %2, %c0_1] : memref<2x4x2x128xf32, #tpu.memory_space<vmem>>, vector<2x1x2x128xf32>
    %4 = vector.shape_cast %3 : vector<2x1x2x128xf32> to vector<2x2x128xf32>
    %c0_2 = arith.constant 0 : index
    %c1 = arith.constant 1 : index
    %5 = arith.index_cast %1 : i32 to index
    %c0_3 = arith.constant 0 : index
    %6 = vector.load %arg2[%c0_2, %c1, %5, %c0_3] : memref<2x4x2x128xf32, #tpu.memory_space<vmem>>, vector<2x1x2x128xf32>
    %7 = vector.shape_cast %6 : vector<2x1x2x128xf32> to vector<2x2x128xf32>
    %c0_4 = arith.constant 0 : index
    %c2 = arith.constant 2 : index
    %8 = arith.index_cast %1 : i32 to index
    %c0_5 = arith.constant 0 : index
    %9 = vector.load %arg2[%c0_4, %c2, %8, %c0_5] : memref<2x4x2x128xf32, #tpu.memory_space<vmem>>, vector<2x1x2x128xf32>
    %10 = vector.shape_cast %9 : vector<2x1x2x128xf32> to vector<2x2x128xf32>
    %c0_6 = arith.constant 0 : index
    %c3 = arith.constant 3 : index
    %11 = arith.index_cast %1 : i32 to index
    %c0_7 = arith.constant 0 : index
    %12 = vector.load %arg2[%c0_6, %c3, %11, %c0_7] : memref<2x4x2x128xf32, #tpu.memory_space<vmem>>, vector<2x1x2x128xf32>
    %13 = vector.shape_cast %12 : vector<2x1x2x128xf32> to vector<2x2x128xf32>
    %c0_8 = arith.constant 0 : index
    %c0_9 = arith.constant 0 : index
    %14 = arith.index_cast %1 : i32 to index
    %c0_10 = arith.constant 0 : index
    %15 = vector.load %arg3[%c0_8, %c0_9, %14, %c0_10] : memref<2x4x2x128xf32, #tpu.memory_space<vmem>>, vector<2x1x2x128xf32>
    %16 = vector.shape_cast %15 : vector<2x1x2x128xf32> to vector<2x2x128xf32>
    %c0_11 = arith.constant 0 : index
    %c1_12 = arith.constant 1 : index
    %17 = arith.index_cast %1 : i32 to index
    %c0_13 = arith.constant 0 : index
    %18 = vector.load %arg3[%c0_11, %c1_12, %17, %c0_13] : memref<2x4x2x128xf32, #tpu.memory_space<vmem>>, vector<2x1x2x128xf32>
    %19 = vector.shape_cast %18 : vector<2x1x2x128xf32> to vector<2x2x128xf32>
    %c0_14 = arith.constant 0 : index
    %c2_15 = arith.constant 2 : index
    %20 = arith.index_cast %1 : i32 to index
    %c0_16 = arith.constant 0 : index
    %21 = vector.load %arg3[%c0_14, %c2_15, %20, %c0_16] : memref<2x4x2x128xf32, #tpu.memory_space<vmem>>, vector<2x1x2x128xf32>
    %22 = vector.shape_cast %21 : vector<2x1x2x128xf32> to vector<2x2x128xf32>
    %c0_17 = arith.constant 0 : index
    %c3_18 = arith.constant 3 : index
    %23 = arith.index_cast %1 : i32 to index
    %c0_19 = arith.constant 0 : index
    %24 = vector.load %arg3[%c0_17, %c3_18, %23, %c0_19] : memref<2x4x2x128xf32, #tpu.memory_space<vmem>>, vector<2x1x2x128xf32>
    %25 = vector.shape_cast %24 : vector<2x1x2x128xf32> to vector<2x2x128xf32>
    %c0_20 = arith.constant 0 : index
    %c0_21 = arith.constant 0 : index
    %26 = memref.load %arg4[%c0_20, %c0_21] : memref<4x4xf32, #tpu.memory_space<smem>>
    %27 = vector.broadcast %26 : f32 to vector<2x2x128xf32>
    %28 = arith.mulf %27, %4 : vector<2x2x128xf32>
    %c0_22 = arith.constant 0 : index
    %c1_23 = arith.constant 1 : index
    %29 = memref.load %arg4[%c0_22, %c1_23] : memref<4x4xf32, #tpu.memory_space<smem>>
    %30 = vector.broadcast %29 : f32 to vector<2x2x128xf32>
    %31 = arith.mulf %30, %7 : vector<2x2x128xf32>
    %32 = arith.addf %28, %31 : vector<2x2x128xf32>
    %c0_24 = arith.constant 0 : index
    %c2_25 = arith.constant 2 : index
    %33 = memref.load %arg4[%c0_24, %c2_25] : memref<4x4xf32, #tpu.memory_space<smem>>
    %34 = vector.broadcast %33 : f32 to vector<2x2x128xf32>
    %35 = arith.mulf %34, %10 : vector<2x2x128xf32>
    %36 = arith.addf %32, %35 : vector<2x2x128xf32>
    %c0_26 = arith.constant 0 : index
    %c3_27 = arith.constant 3 : index
    %37 = memref.load %arg4[%c0_26, %c3_27] : memref<4x4xf32, #tpu.memory_space<smem>>
    %38 = vector.broadcast %37 : f32 to vector<2x2x128xf32>
    %39 = arith.mulf %38, %13 : vector<2x2x128xf32>
    %40 = arith.addf %36, %39 : vector<2x2x128xf32>
    %c0_28 = arith.constant 0 : index
    %c0_29 = arith.constant 0 : index
    %41 = memref.load %arg5[%c0_28, %c0_29] : memref<4x4xf32, #tpu.memory_space<smem>>
    %42 = vector.broadcast %41 : f32 to vector<2x2x128xf32>
    %43 = arith.mulf %42, %16 : vector<2x2x128xf32>
    %44 = arith.addf %40, %43 : vector<2x2x128xf32>
    %c0_30 = arith.constant 0 : index
    %c1_31 = arith.constant 1 : index
    %45 = memref.load %arg5[%c0_30, %c1_31] : memref<4x4xf32, #tpu.memory_space<smem>>
    %46 = vector.broadcast %45 : f32 to vector<2x2x128xf32>
    %47 = arith.mulf %46, %19 : vector<2x2x128xf32>
    %48 = arith.addf %44, %47 : vector<2x2x128xf32>
    %c0_32 = arith.constant 0 : index
    %c2_33 = arith.constant 2 : index
    %49 = memref.load %arg5[%c0_32, %c2_33] : memref<4x4xf32, #tpu.memory_space<smem>>
    %50 = vector.broadcast %49 : f32 to vector<2x2x128xf32>
    %51 = arith.mulf %50, %22 : vector<2x2x128xf32>
    %52 = arith.addf %48, %51 : vector<2x2x128xf32>
    %c0_34 = arith.constant 0 : index
    %c3_35 = arith.constant 3 : index
    %53 = memref.load %arg5[%c0_34, %c3_35] : memref<4x4xf32, #tpu.memory_space<smem>>
    %54 = vector.broadcast %53 : f32 to vector<2x2x128xf32>
    %55 = arith.mulf %54, %25 : vector<2x2x128xf32>
    %56 = arith.addf %52, %55 : vector<2x2x128xf32>
    %cst = arith.constant 0.000000e+00 : f32
    %57 = vector.broadcast %cst : f32 to vector<2x2x128xf32>
    %58 = arith.maximumf %56, %57 : vector<2x2x128xf32>
    %c1_36 = arith.constant 1 : index
    %c0_37 = arith.constant 0 : index
    %59 = memref.load %arg4[%c1_36, %c0_37] : memref<4x4xf32, #tpu.memory_space<smem>>
    %60 = vector.broadcast %59 : f32 to vector<2x2x128xf32>
    %61 = arith.mulf %60, %4 : vector<2x2x128xf32>
    %c1_38 = arith.constant 1 : index
    %c1_39 = arith.constant 1 : index
    %62 = memref.load %arg4[%c1_38, %c1_39] : memref<4x4xf32, #tpu.memory_space<smem>>
    %63 = vector.broadcast %62 : f32 to vector<2x2x128xf32>
    %64 = arith.mulf %63, %7 : vector<2x2x128xf32>
    %65 = arith.addf %61, %64 : vector<2x2x128xf32>
    %c1_40 = arith.constant 1 : index
    %c2_41 = arith.constant 2 : index
    %66 = memref.load %arg4[%c1_40, %c2_41] : memref<4x4xf32, #tpu.memory_space<smem>>
    %67 = vector.broadcast %66 : f32 to vector<2x2x128xf32>
    %68 = arith.mulf %67, %10 : vector<2x2x128xf32>
    %69 = arith.addf %65, %68 : vector<2x2x128xf32>
    %c1_42 = arith.constant 1 : index
    %c3_43 = arith.constant 3 : index
    %70 = memref.load %arg4[%c1_42, %c3_43] : memref<4x4xf32, #tpu.memory_space<smem>>
    %71 = vector.broadcast %70 : f32 to vector<2x2x128xf32>
    %72 = arith.mulf %71, %13 : vector<2x2x128xf32>
    %73 = arith.addf %69, %72 : vector<2x2x128xf32>
    %c1_44 = arith.constant 1 : index
    %c0_45 = arith.constant 0 : index
    %74 = memref.load %arg5[%c1_44, %c0_45] : memref<4x4xf32, #tpu.memory_space<smem>>
    %75 = vector.broadcast %74 : f32 to vector<2x2x128xf32>
    %76 = arith.mulf %75, %16 : vector<2x2x128xf32>
    %77 = arith.addf %73, %76 : vector<2x2x128xf32>
    %c1_46 = arith.constant 1 : index
    %c1_47 = arith.constant 1 : index
    %78 = memref.load %arg5[%c1_46, %c1_47] : memref<4x4xf32, #tpu.memory_space<smem>>
    %79 = vector.broadcast %78 : f32 to vector<2x2x128xf32>
    %80 = arith.mulf %79, %19 : vector<2x2x128xf32>
    %81 = arith.addf %77, %80 : vector<2x2x128xf32>
    %c1_48 = arith.constant 1 : index
    %c2_49 = arith.constant 2 : index
    %82 = memref.load %arg5[%c1_48, %c2_49] : memref<4x4xf32, #tpu.memory_space<smem>>
    %83 = vector.broadcast %82 : f32 to vector<2x2x128xf32>
    %84 = arith.mulf %83, %22 : vector<2x2x128xf32>
    %85 = arith.addf %81, %84 : vector<2x2x128xf32>
    %c1_50 = arith.constant 1 : index
    %c3_51 = arith.constant 3 : index
    %86 = memref.load %arg5[%c1_50, %c3_51] : memref<4x4xf32, #tpu.memory_space<smem>>
    %87 = vector.broadcast %86 : f32 to vector<2x2x128xf32>
    %88 = arith.mulf %87, %25 : vector<2x2x128xf32>
    %89 = arith.addf %85, %88 : vector<2x2x128xf32>
    %cst_52 = arith.constant 0.000000e+00 : f32
    %90 = vector.broadcast %cst_52 : f32 to vector<2x2x128xf32>
    %91 = arith.maximumf %89, %90 : vector<2x2x128xf32>
    %c2_53 = arith.constant 2 : index
    %c0_54 = arith.constant 0 : index
    %92 = memref.load %arg4[%c2_53, %c0_54] : memref<4x4xf32, #tpu.memory_space<smem>>
    %93 = vector.broadcast %92 : f32 to vector<2x2x128xf32>
    %94 = arith.mulf %93, %4 : vector<2x2x128xf32>
    %c2_55 = arith.constant 2 : index
    %c1_56 = arith.constant 1 : index
    %95 = memref.load %arg4[%c2_55, %c1_56] : memref<4x4xf32, #tpu.memory_space<smem>>
    %96 = vector.broadcast %95 : f32 to vector<2x2x128xf32>
    %97 = arith.mulf %96, %7 : vector<2x2x128xf32>
    %98 = arith.addf %94, %97 : vector<2x2x128xf32>
    %c2_57 = arith.constant 2 : index
    %c2_58 = arith.constant 2 : index
    %99 = memref.load %arg4[%c2_57, %c2_58] : memref<4x4xf32, #tpu.memory_space<smem>>
    %100 = vector.broadcast %99 : f32 to vector<2x2x128xf32>
    %101 = arith.mulf %100, %10 : vector<2x2x128xf32>
    %102 = arith.addf %98, %101 : vector<2x2x128xf32>
    %c2_59 = arith.constant 2 : index
    %c3_60 = arith.constant 3 : index
    %103 = memref.load %arg4[%c2_59, %c3_60] : memref<4x4xf32, #tpu.memory_space<smem>>
    %104 = vector.broadcast %103 : f32 to vector<2x2x128xf32>
    %105 = arith.mulf %104, %13 : vector<2x2x128xf32>
    %106 = arith.addf %102, %105 : vector<2x2x128xf32>
    %c2_61 = arith.constant 2 : index
    %c0_62 = arith.constant 0 : index
    %107 = memref.load %arg5[%c2_61, %c0_62] : memref<4x4xf32, #tpu.memory_space<smem>>
    %108 = vector.broadcast %107 : f32 to vector<2x2x128xf32>
    %109 = arith.mulf %108, %16 : vector<2x2x128xf32>
    %110 = arith.addf %106, %109 : vector<2x2x128xf32>
    %c2_63 = arith.constant 2 : index
    %c1_64 = arith.constant 1 : index
    %111 = memref.load %arg5[%c2_63, %c1_64] : memref<4x4xf32, #tpu.memory_space<smem>>
    %112 = vector.broadcast %111 : f32 to vector<2x2x128xf32>
    %113 = arith.mulf %112, %19 : vector<2x2x128xf32>
    %114 = arith.addf %110, %113 : vector<2x2x128xf32>
    %c2_65 = arith.constant 2 : index
    %c2_66 = arith.constant 2 : index
    %115 = memref.load %arg5[%c2_65, %c2_66] : memref<4x4xf32, #tpu.memory_space<smem>>
    %116 = vector.broadcast %115 : f32 to vector<2x2x128xf32>
    %117 = arith.mulf %116, %22 : vector<2x2x128xf32>
    %118 = arith.addf %114, %117 : vector<2x2x128xf32>
    %c2_67 = arith.constant 2 : index
    %c3_68 = arith.constant 3 : index
    %119 = memref.load %arg5[%c2_67, %c3_68] : memref<4x4xf32, #tpu.memory_space<smem>>
    %120 = vector.broadcast %119 : f32 to vector<2x2x128xf32>
    %121 = arith.mulf %120, %25 : vector<2x2x128xf32>
    %122 = arith.addf %118, %121 : vector<2x2x128xf32>
    %cst_69 = arith.constant 0.000000e+00 : f32
    %123 = vector.broadcast %cst_69 : f32 to vector<2x2x128xf32>
    %124 = arith.maximumf %122, %123 : vector<2x2x128xf32>
    %c3_70 = arith.constant 3 : index
    %c0_71 = arith.constant 0 : index
    %125 = memref.load %arg4[%c3_70, %c0_71] : memref<4x4xf32, #tpu.memory_space<smem>>
    %126 = vector.broadcast %125 : f32 to vector<2x2x128xf32>
    %127 = arith.mulf %126, %4 : vector<2x2x128xf32>
    %c3_72 = arith.constant 3 : index
    %c1_73 = arith.constant 1 : index
    %128 = memref.load %arg4[%c3_72, %c1_73] : memref<4x4xf32, #tpu.memory_space<smem>>
    %129 = vector.broadcast %128 : f32 to vector<2x2x128xf32>
    %130 = arith.mulf %129, %7 : vector<2x2x128xf32>
    %131 = arith.addf %127, %130 : vector<2x2x128xf32>
    %c3_74 = arith.constant 3 : index
    %c2_75 = arith.constant 2 : index
    %132 = memref.load %arg4[%c3_74, %c2_75] : memref<4x4xf32, #tpu.memory_space<smem>>
    %133 = vector.broadcast %132 : f32 to vector<2x2x128xf32>
    %134 = arith.mulf %133, %10 : vector<2x2x128xf32>
    %135 = arith.addf %131, %134 : vector<2x2x128xf32>
    %c3_76 = arith.constant 3 : index
    %c3_77 = arith.constant 3 : index
    %136 = memref.load %arg4[%c3_76, %c3_77] : memref<4x4xf32, #tpu.memory_space<smem>>
    %137 = vector.broadcast %136 : f32 to vector<2x2x128xf32>
    %138 = arith.mulf %137, %13 : vector<2x2x128xf32>
    %139 = arith.addf %135, %138 : vector<2x2x128xf32>
    %c3_78 = arith.constant 3 : index
    %c0_79 = arith.constant 0 : index
    %140 = memref.load %arg5[%c3_78, %c0_79] : memref<4x4xf32, #tpu.memory_space<smem>>
    %141 = vector.broadcast %140 : f32 to vector<2x2x128xf32>
    %142 = arith.mulf %141, %16 : vector<2x2x128xf32>
    %143 = arith.addf %139, %142 : vector<2x2x128xf32>
    %c3_80 = arith.constant 3 : index
    %c1_81 = arith.constant 1 : index
    %144 = memref.load %arg5[%c3_80, %c1_81] : memref<4x4xf32, #tpu.memory_space<smem>>
    %145 = vector.broadcast %144 : f32 to vector<2x2x128xf32>
    %146 = arith.mulf %145, %19 : vector<2x2x128xf32>
    %147 = arith.addf %143, %146 : vector<2x2x128xf32>
    %c3_82 = arith.constant 3 : index
    %c2_83 = arith.constant 2 : index
    %148 = memref.load %arg5[%c3_82, %c2_83] : memref<4x4xf32, #tpu.memory_space<smem>>
    %149 = vector.broadcast %148 : f32 to vector<2x2x128xf32>
    %150 = arith.mulf %149, %22 : vector<2x2x128xf32>
    %151 = arith.addf %147, %150 : vector<2x2x128xf32>
    %c3_84 = arith.constant 3 : index
    %c3_85 = arith.constant 3 : index
    %152 = memref.load %arg5[%c3_84, %c3_85] : memref<4x4xf32, #tpu.memory_space<smem>>
    %153 = vector.broadcast %152 : f32 to vector<2x2x128xf32>
    %154 = arith.mulf %153, %25 : vector<2x2x128xf32>
    %155 = arith.addf %151, %154 : vector<2x2x128xf32>
    %cst_86 = arith.constant 0.000000e+00 : f32
    %156 = vector.broadcast %cst_86 : f32 to vector<2x2x128xf32>
    %157 = arith.maximumf %155, %156 : vector<2x2x128xf32>
    %c0_87 = arith.constant 0 : index
    %c0_88 = arith.constant 0 : index
    %158 = memref.load %arg6[%c0_87, %c0_88] : memref<4x4xf32, #tpu.memory_space<smem>>
    %159 = vector.broadcast %158 : f32 to vector<2x2x128xf32>
    %160 = arith.mulf %159, %58 : vector<2x2x128xf32>
    %c0_89 = arith.constant 0 : index
    %c1_90 = arith.constant 1 : index
    %161 = memref.load %arg6[%c0_89, %c1_90] : memref<4x4xf32, #tpu.memory_space<smem>>
    %162 = vector.broadcast %161 : f32 to vector<2x2x128xf32>
    %163 = arith.mulf %162, %91 : vector<2x2x128xf32>
    %164 = arith.addf %160, %163 : vector<2x2x128xf32>
    %c0_91 = arith.constant 0 : index
    %c2_92 = arith.constant 2 : index
    %165 = memref.load %arg6[%c0_91, %c2_92] : memref<4x4xf32, #tpu.memory_space<smem>>
    %166 = vector.broadcast %165 : f32 to vector<2x2x128xf32>
    %167 = arith.mulf %166, %124 : vector<2x2x128xf32>
    %168 = arith.addf %164, %167 : vector<2x2x128xf32>
    %c0_93 = arith.constant 0 : index
    %c3_94 = arith.constant 3 : index
    %169 = memref.load %arg6[%c0_93, %c3_94] : memref<4x4xf32, #tpu.memory_space<smem>>
    %170 = vector.broadcast %169 : f32 to vector<2x2x128xf32>
    %171 = arith.mulf %170, %157 : vector<2x2x128xf32>
    %172 = arith.addf %168, %171 : vector<2x2x128xf32>
    %173 = arith.negf %172 : vector<2x2x128xf32>
    %174 = math.exp %173 : vector<2x2x128xf32>
    %cst_95 = arith.constant 1.000000e+00 : f32
    %175 = vector.broadcast %cst_95 : f32 to vector<2x2x128xf32>
    %176 = arith.addf %175, %174 : vector<2x2x128xf32>
    %177 = arith.divf %175, %176 : vector<2x2x128xf32>
    %178 = arith.mulf %4, %177 : vector<2x2x128xf32>
    %c0_96 = arith.constant 0 : index
    %c0_97 = arith.constant 0 : index
    %179 = arith.index_cast %1 : i32 to index
    %c0_98 = arith.constant 0 : index
    %180 = vector.load %arg7[%c0_96, %c0_97, %179, %c0_98] : memref<2x4x2x128xf32, #tpu.memory_space<vmem>>, vector<2x1x2x128xf32>
    %181 = vector.shape_cast %180 : vector<2x1x2x128xf32> to vector<2x2x128xf32>
    %182 = vector.shape_cast %178 : vector<2x2x128xf32> to vector<2x1x2x128xf32>
    tpu.vector_store %arg7[%c0_96, %c0_97, %179, %c0_98], %182 {strides = array<i32>} : memref<2x4x2x128xf32, #tpu.memory_space<vmem>>, vector<2x1x2x128xf32>,
    %c1_99 = arith.constant 1 : index
    %c0_100 = arith.constant 0 : index
    %183 = memref.load %arg6[%c1_99, %c0_100] : memref<4x4xf32, #tpu.memory_space<smem>>
    %184 = vector.broadcast %183 : f32 to vector<2x2x128xf32>
    %185 = arith.mulf %184, %58 : vector<2x2x128xf32>
    %c1_101 = arith.constant 1 : index
    %c1_102 = arith.constant 1 : index
    %186 = memref.load %arg6[%c1_101, %c1_102] : memref<4x4xf32, #tpu.memory_space<smem>>
    %187 = vector.broadcast %186 : f32 to vector<2x2x128xf32>
    %188 = arith.mulf %187, %91 : vector<2x2x128xf32>
    %189 = arith.addf %185, %188 : vector<2x2x128xf32>
    %c1_103 = arith.constant 1 : index
    %c2_104 = arith.constant 2 : index
    %190 = memref.load %arg6[%c1_103, %c2_104] : memref<4x4xf32, #tpu.memory_space<smem>>
    %191 = vector.broadcast %190 : f32 to vector<2x2x128xf32>
    %192 = arith.mulf %191, %124 : vector<2x2x128xf32>
    %193 = arith.addf %189, %192 : vector<2x2x128xf32>
    %c1_105 = arith.constant 1 : index
    %c3_106 = arith.constant 3 : index
    %194 = memref.load %arg6[%c1_105, %c3_106] : memref<4x4xf32, #tpu.memory_space<smem>>
    %195 = vector.broadcast %194 : f32 to vector<2x2x128xf32>
    %196 = arith.mulf %195, %157 : vector<2x2x128xf32>
    %197 = arith.addf %193, %196 : vector<2x2x128xf32>
    %198 = arith.negf %197 : vector<2x2x128xf32>
    %199 = math.exp %198 : vector<2x2x128xf32>
    %cst_107 = arith.constant 1.000000e+00 : f32
    %200 = vector.broadcast %cst_107 : f32 to vector<2x2x128xf32>
    %201 = arith.addf %200, %199 : vector<2x2x128xf32>
    %202 = arith.divf %200, %201 : vector<2x2x128xf32>
    %203 = arith.mulf %7, %202 : vector<2x2x128xf32>
    %c0_108 = arith.constant 0 : index
    %c1_109 = arith.constant 1 : index
    %204 = arith.index_cast %1 : i32 to index
    %c0_110 = arith.constant 0 : index
    %205 = vector.load %arg7[%c0_108, %c1_109, %204, %c0_110] : memref<2x4x2x128xf32, #tpu.memory_space<vmem>>, vector<2x1x2x128xf32>
    %206 = vector.shape_cast %205 : vector<2x1x2x128xf32> to vector<2x2x128xf32>
    %207 = vector.shape_cast %203 : vector<2x2x128xf32> to vector<2x1x2x128xf32>
    tpu.vector_store %arg7[%c0_108, %c1_109, %204, %c0_110], %207 {strides = array<i32>} : memref<2x4x2x128xf32, #tpu.memory_space<vmem>>, vector<2x1x2x128xf32>,
    %c2_111 = arith.constant 2 : index
    %c0_112 = arith.constant 0 : index
    %208 = memref.load %arg6[%c2_111, %c0_112] : memref<4x4xf32, #tpu.memory_space<smem>>
    %209 = vector.broadcast %208 : f32 to vector<2x2x128xf32>
    %210 = arith.mulf %209, %58 : vector<2x2x128xf32>
    %c2_113 = arith.constant 2 : index
    %c1_114 = arith.constant 1 : index
    %211 = memref.load %arg6[%c2_113, %c1_114] : memref<4x4xf32, #tpu.memory_space<smem>>
    %212 = vector.broadcast %211 : f32 to vector<2x2x128xf32>
    %213 = arith.mulf %212, %91 : vector<2x2x128xf32>
    %214 = arith.addf %210, %213 : vector<2x2x128xf32>
    %c2_115 = arith.constant 2 : index
    %c2_116 = arith.constant 2 : index
    %215 = memref.load %arg6[%c2_115, %c2_116] : memref<4x4xf32, #tpu.memory_space<smem>>
    %216 = vector.broadcast %215 : f32 to vector<2x2x128xf32>
    %217 = arith.mulf %216, %124 : vector<2x2x128xf32>
    %218 = arith.addf %214, %217 : vector<2x2x128xf32>
    %c2_117 = arith.constant 2 : index
    %c3_118 = arith.constant 3 : index
    %219 = memref.load %arg6[%c2_117, %c3_118] : memref<4x4xf32, #tpu.memory_space<smem>>
    %220 = vector.broadcast %219 : f32 to vector<2x2x128xf32>
    %221 = arith.mulf %220, %157 : vector<2x2x128xf32>
    %222 = arith.addf %218, %221 : vector<2x2x128xf32>
    %223 = arith.negf %222 : vector<2x2x128xf32>
    %224 = math.exp %223 : vector<2x2x128xf32>
    %cst_119 = arith.constant 1.000000e+00 : f32
    %225 = vector.broadcast %cst_119 : f32 to vector<2x2x128xf32>
    %226 = arith.addf %225, %224 : vector<2x2x128xf32>
    %227 = arith.divf %225, %226 : vector<2x2x128xf32>
    %228 = arith.mulf %10, %227 : vector<2x2x128xf32>
    %c0_120 = arith.constant 0 : index
    %c2_121 = arith.constant 2 : index
    %229 = arith.index_cast %1 : i32 to index
    %c0_122 = arith.constant 0 : index
    %230 = vector.load %arg7[%c0_120, %c2_121, %229, %c0_122] : memref<2x4x2x128xf32, #tpu.memory_space<vmem>>, vector<2x1x2x128xf32>
    %231 = vector.shape_cast %230 : vector<2x1x2x128xf32> to vector<2x2x128xf32>
    %232 = vector.shape_cast %228 : vector<2x2x128xf32> to vector<2x1x2x128xf32>
    tpu.vector_store %arg7[%c0_120, %c2_121, %229, %c0_122], %232 {strides = array<i32>} : memref<2x4x2x128xf32, #tpu.memory_space<vmem>>, vector<2x1x2x128xf32>,
    %c3_123 = arith.constant 3 : index
    %c0_124 = arith.constant 0 : index
    %233 = memref.load %arg6[%c3_123, %c0_124] : memref<4x4xf32, #tpu.memory_space<smem>>
    %234 = vector.broadcast %233 : f32 to vector<2x2x128xf32>
    %235 = arith.mulf %234, %58 : vector<2x2x128xf32>
    %c3_125 = arith.constant 3 : index
    %c1_126 = arith.constant 1 : index
    %236 = memref.load %arg6[%c3_125, %c1_126] : memref<4x4xf32, #tpu.memory_space<smem>>
    %237 = vector.broadcast %236 : f32 to vector<2x2x128xf32>
    %238 = arith.mulf %237, %91 : vector<2x2x128xf32>
    %239 = arith.addf %235, %238 : vector<2x2x128xf32>
    %c3_127 = arith.constant 3 : index
    %c2_128 = arith.constant 2 : index
    %240 = memref.load %arg6[%c3_127, %c2_128] : memref<4x4xf32, #tpu.memory_space<smem>>
    %241 = vector.broadcast %240 : f32 to vector<2x2x128xf32>
    %242 = arith.mulf %241, %124 : vector<2x2x128xf32>
    %243 = arith.addf %239, %242 : vector<2x2x128xf32>
    %c3_129 = arith.constant 3 : index
    %c3_130 = arith.constant 3 : index
    %244 = memref.load %arg6[%c3_129, %c3_130] : memref<4x4xf32, #tpu.memory_space<smem>>
    %245 = vector.broadcast %244 : f32 to vector<2x2x128xf32>
    %246 = arith.mulf %245, %157 : vector<2x2x128xf32>
    %247 = arith.addf %243, %246 : vector<2x2x128xf32>
    %248 = arith.negf %247 : vector<2x2x128xf32>
    %249 = math.exp %248 : vector<2x2x128xf32>
    %cst_131 = arith.constant 1.000000e+00 : f32
    %250 = vector.broadcast %cst_131 : f32 to vector<2x2x128xf32>
    %251 = arith.addf %250, %249 : vector<2x2x128xf32>
    %252 = arith.divf %250, %251 : vector<2x2x128xf32>
    %253 = arith.mulf %13, %252 : vector<2x2x128xf32>
    %c0_132 = arith.constant 0 : index
    %c3_133 = arith.constant 3 : index
    %254 = arith.index_cast %1 : i32 to index
    %c0_134 = arith.constant 0 : index
    %255 = vector.load %arg7[%c0_132, %c3_133, %254, %c0_134] : memref<2x4x2x128xf32, #tpu.memory_space<vmem>>, vector<2x1x2x128xf32>
    %256 = vector.shape_cast %255 : vector<2x1x2x128xf32> to vector<2x2x128xf32>
    %257 = vector.shape_cast %253 : vector<2x2x128xf32> to vector<2x1x2x128xf32>
    tpu.vector_store %arg7[%c0_132, %c3_133, %254, %c0_134], %257 {strides = array<i32>} : memref<2x4x2x128xf32, #tpu.memory_space<vmem>>, vector<2x1x2x128xf32>,
    %c1_i32 = arith.constant 1 : i32
    return
  }
  func.func @transform_0(%arg0: i32, %arg1: i32) -> (i32, i32, i32, i32) {
    %c0_i32 = arith.constant 0 : i32
    %c0_i32_0 = arith.constant 0 : i32
    %c0_i32_1 = arith.constant 0 : i32
    return %arg0, %c0_i32, %arg1, %c0_i32_0 : i32, i32, i32, i32
  }
  func.func @transform_1(%arg0: i32, %arg1: i32) -> (i32, i32, i32, i32) {
    %c0_i32 = arith.constant 0 : i32
    %c0_i32_0 = arith.constant 0 : i32
    %c0_i32_1 = arith.constant 0 : i32
    return %arg0, %c0_i32, %arg1, %c0_i32_0 : i32, i32, i32, i32
  }
  func.func @transform_2(%arg0: i32, %arg1: i32) -> (i32, i32) {
    %c0_i32 = arith.constant 0 : i32
    %c0_i32_0 = arith.constant 0 : i32
    %c0_i32_1 = arith.constant 0 : i32
    return %c0_i32, %c0_i32_0 : i32, i32
  }
  func.func @transform_3(%arg0: i32, %arg1: i32) -> (i32, i32) {
    %c0_i32 = arith.constant 0 : i32
    %c0_i32_0 = arith.constant 0 : i32
    %c0_i32_1 = arith.constant 0 : i32
    return %c0_i32, %c0_i32_0 : i32, i32
  }
  func.func @transform_4(%arg0: i32, %arg1: i32) -> (i32, i32) {
    %c0_i32 = arith.constant 0 : i32
    %c0_i32_0 = arith.constant 0 : i32
    %c0_i32_1 = arith.constant 0 : i32
    return %c0_i32, %c0_i32_0 : i32, i32
  }
  func.func @transform_5(%arg0: i32, %arg1: i32) -> (i32, i32, i32, i32) {
    %c0_i32 = arith.constant 0 : i32
    %c0_i32_0 = arith.constant 0 : i32
    %c0_i32_1 = arith.constant 0 : i32
    return %arg0, %c0_i32, %arg1, %c0_i32_0 : i32, i32, i32, i32
  }
}

</mosaic_0001>

<llo_original>
// kernel: attention_gate.1
$region0: #{attention_gate.1}
  #allocation0 [shape = 'u32[]', space=smem, size = 0x4, offset = 0x4, fixed_abs, tag = 'smem constant byte address 0x4 - core index']
  #allocation1 [shape = 'u32[72,128]{1,0:T(1,128)}', space=vmem, size = 0x9000, scoped, tag = 'internal scratch']
  %s0 = inlined_call_operand.vmem [shape: f32[2,4,2,128], index: 0, kind: input, shape index: {}]
  %s1 = inlined_call_operand.vmem [shape: f32[2,4,2,128], index: 1, kind: input, shape index: {}]
  %s2 = inlined_call_operand.vmem [shape: f32[4,4], index: 2, kind: input, shape index: {}]
  %s3 = inlined_call_operand.vmem [shape: f32[4,4], index: 3, kind: input, shape index: {}]
  %s4 = inlined_call_operand.vmem [shape: f32[4,4], index: 4, kind: input, shape index: {}]
  %s5 = inlined_call_operand.vmem [shape: f32[2,4,2,128], index: 5, kind: output, shape index: {}]
  %s6 = sld [smem:[#allocation0]]
  $region42: #{attention_gate.1} parent=0
    _
  %s8 = ssub.s32 1, %s6
  %s9 = scalar_select 0, %s8, %s6
  $region1: #{attention_gate.1} parent=0
    #allocation2 [shape = 'u8[2048]{0}', space=smem, size = 0x800, scoped, tag = 'input window, operand 2, single buffered']
    #allocation3 [shape = 's32[1]{0}', space=sflag, size = 0x4, scoped, tag = 'scoped memory for attention_gate.1']
    #allocation4 [shape = 'u8[2048]{0}', space=smem, size = 0x800, scoped, tag = 'input window, operand 3, single buffered']
    #allocation5 [shape = 's32[1]{0}', space=sflag, size = 0x4, scoped, tag = 'scoped memory for attention_gate.1']
    #allocation6 [shape = 'u8[2048]{0}', space=smem, size = 0x800, scoped, tag = 'input window, operand 4, single buffered']
    %10 = vsyncpa [#allocation3], 0
    %11 = vsyncpa [#allocation5], 0
    // Predicated region
    $region2: #{attention_gate.1} parent=1 // pred_check
      _
    $region3: #{attention_gate.1} parent=1 // pred_check_branch
      %13 = sbr.rel (0) target = $region5
    $region4: #{attention_gate.1} parent=1 // pred_region
      _
    $region5: #{attention_gate.1} parent=1 // pred_fallthru
      _
    // Predicated region
    $region6: #{attention_gate.1} parent=1 // pred_check
      _
    $region7: #{attention_gate.1} parent=1 // pred_check_branch
      %15 = sbr.rel (0) target = $region9
    $region8: #{attention_gate.1} parent=1 // pred_region
      _
    $region9: #{attention_gate.1} parent=1 // pred_fallthru
      _
    // Predicated region
    $region10: #{attention_gate.1} parent=1 // pred_check
      _
    $region11: #{attention_gate.1} parent=1 // pred_check_branch
      %17 = sbr.rel (0) target = $region13
    $region12: #{attention_gate.1} parent=1 // pred_region
      %19 = vsyncadd [#allocation3], 0
      %s21 = sshll.u32 %s2, 4
      %s22 = int_to_ptr.vmem [resolvable:$true] %s21
      %24 = dma.vmem_to_smem %s22, 64, [#allocation2], [#allocation3]
    $region13: #{attention_gate.1} parent=1 // pred_fallthru
      _
    // Predicated region
    $region14: #{attention_gate.1} parent=1 // pred_check
      _
    $region15: #{attention_gate.1} parent=1 // pred_check_branch
      %26 = sbr.rel (0) target = $region17
    $region16: #{attention_gate.1} parent=1 // pred_region
      %28 = vsyncadd [#allocation5], 0
      %s30 = sshll.u32 %s3, 4
      %s31 = int_to_ptr.vmem [resolvable:$true] %s30
      %33 = dma.vmem_to_smem %s31, 64, [#allocation4], [#allocation5]
    $region17: #{attention_gate.1} parent=1 // pred_fallthru
      _
    // Predicated region
    $region18: #{attention_gate.1} parent=1 // pred_check
      _
    $region19: #{attention_gate.1} parent=1 // pred_check_branch
      %35 = sbr.rel (0) target = $region21
    $region20: #{attention_gate.1} parent=1 // pred_region
      %37 = vsyncadd [#allocation5], 0
      %s39 = sshll.u32 %s4, 4
      %s40 = int_to_ptr.vmem [resolvable:$true] %s39
      %42 = dma.vmem_to_smem %s40, 64, [#allocation6], [#allocation5]
    $region21: #{attention_gate.1} parent=1 // pred_fallthru
      _
    // Predicated region
    $region22: #{attention_gate.1} parent=1 // pred_check
      _
    $region23: #{attention_gate.1} parent=1 // pred_check_branch
      %44 = sbr.rel (0) target = $region25
    $region24: #{attention_gate.1} parent=1 // pred_region
      %46 = dma.done [#allocation3], 64
    $region25: #{attention_gate.1} parent=1 // pred_fallthru
      _
    // Predicated region
    $region26: #{attention_gate.1} parent=1 // pred_check
      _
    $region27: #{attention_gate.1} parent=1 // pred_check_branch
      %48 = sbr.rel (0) target = $region29
    $region28: #{attention_gate.1} parent=1 // pred_region
      %50 = dma.done [#allocation5], 64
    $region29: #{attention_gate.1} parent=1 // pred_fallthru
      _
    // Predicated region
    $region30: #{attention_gate.1} parent=1 // pred_check
      _
    $region31: #{attention_gate.1} parent=1 // pred_check_branch
      %52 = sbr.rel (0) target = $region33
    $region32: #{attention_gate.1} parent=1 // pred_region
      %54 = dma.done [#allocation5], 64
    $region33: #{attention_gate.1} parent=1 // pred_fallthru
      _
    %55 = sfence
    %v56 = vld [vmem:[%s0] sm:$0x3]
    %v57 = vld [vmem:[%s0 + $0x8] sm:$0x3]
    %s58 = sadd.s32 0, 2
    %s59 = scalar_lea.vmem %s0, %s58
    %v60 = vld [vmem:[%s59] sm:$0x3]
    %v61 = vld [vmem:[%s59 + $0x8] sm:$0x3]
    %s62 = sadd.s32 0, 4
    %s63 = scalar_lea.vmem %s0, %s62
    %v64 = vld [vmem:[%s63] sm:$0x3]
    %v65 = vld [vmem:[%s63 + $0x8] sm:$0x3]
    %s66 = sadd.s32 0, 6
    %s67 = scalar_lea.vmem %s0, %s66
    %v68 = vld [vmem:[%s67] sm:$0x3]
    %v69 = vld [vmem:[%s67 + $0x8] sm:$0x3]
    %v70 = vld [vmem:[%s1] sm:$0x3]
    %v71 = vld [vmem:[%s1 + $0x8] sm:$0x3]
    %s72 = scalar_lea.vmem %s1, %s58
    %v73 = vld [vmem:[%s72] sm:$0x3]
    %v74 = vld [vmem:[%s72 + $0x8] sm:$0x3]
    %s75 = scalar_lea.vmem %s1, %s62
    %v76 = vld [vmem:[%s75] sm:$0x3]
    %v77 = vld [vmem:[%s75 + $0x8] sm:$0x3]
    %s78 = scalar_lea.vmem %s1, %s66
    %v79 = vld [vmem:[%s78] sm:$0x3]
    %v80 = vld [vmem:[%s78 + $0x8] sm:$0x3]
    %s81 = sld [smem:[#allocation2]]
    %v82 = vstv %s81
    %v83 = vmul.f32 %v82, %v56
    %v84 = vmul.f32 %v82, %v57
    %s85 = sld [smem:[#allocation2 + $0x1]]
    %v86 = vstv %s85
    %v87 = vmul.f32 %v86, %v60
    %v88 = vmul.f32 %v86, %v61
    %v89 = vadd.f32 %v83, %v87
    %v90 = vadd.f32 %v84, %v88
    %s91 = sld [smem:[#allocation2 + $0x2]]
    %v92 = vstv %s91
    %v93 = vmul.f32 %v92, %v64
    %v94 = vmul.f32 %v92, %v65
    %v95 = vadd.f32 %v89, %v93
    %v96 = vadd.f32 %v90, %v94
    %s97 = sld [smem:[#allocation2 + $0x3]]
    %v98 = vstv %s97
    %v99 = vmul.f32 %v98, %v68
    %v100 = vmul.f32 %v98, %v69
    %v101 = vadd.f32 %v95, %v99
    %v102 = vadd.f32 %v96, %v100
    %s103 = sld [smem:[#allocation4]]
    %v104 = vstv %s103
    %v105 = vmul.f32 %v104, %v70
    %v106 = vmul.f32 %v104, %v71
    %v107 = vadd.f32 %v101, %v105
    %v108 = vadd.f32 %v102, %v106
    %s109 = sld [smem:[#allocation4 + $0x1]]
    %v110 = vstv %s109
    %v111 = vmul.f32 %v110, %v73
    %v112 = vmul.f32 %v110, %v74
    %v113 = vadd.f32 %v107, %v111
    %v114 = vadd.f32 %v108, %v112
    %s115 = sld [smem:[#allocation4 + $0x2]]
    %v116 = vstv %s115
    %v117 = vmul.f32 %v116, %v76
    %v118 = vmul.f32 %v116, %v77
    %v119 = vadd.f32 %v113, %v117
    %v120 = vadd.f32 %v114, %v118
    %s121 = sld [smem:[#allocation4 + $0x3]]
    %v122 = vstv %s121
    %v123 = vmul.f32 %v122, %v79
    %v124 = vmul.f32 %v122, %v80
    %v125 = vadd.f32 %v119, %v123
    %v126 = vadd.f32 %v120, %v124
    %v127 = vmax.f32 %v125, 0.0
    %v128 = vmax.f32 %v126, 0.0
    %s129 = sld [smem:[#allocation2 + $0x80]]
    %v130 = vstv %s129
    %v131 = vmul.f32 %v130, %v56
    %v132 = vmul.f32 %v130, %v57
    %s133 = sld [smem:[#allocation2 + $0x81]]
    %v134 = vstv %s133
    %v135 = vmul.f32 %v134, %v60
    %v136 = vmul.f32 %v134, %v61
    %v137 = vadd.f32 %v131, %v135
    %v138 = vadd.f32 %v132, %v136
    %s139 = sld [smem:[#allocation2 + $0x82]]
    %v140 = vstv %s139
    %v141 = vmul.f32 %v140, %v64
    %v142 = vmul.f32 %v140, %v65
    %v143 = vadd.f32 %v137, %v141
    %v144 = vadd.f32 %v138, %v142
    %s145 = sld [smem:[#allocation2 + $0x83]]
    %v146 = vstv %s145
    %v147 = vmul.f32 %v146, %v68
    %v148 = vmul.f32 %v146, %v69
    %v149 = vadd.f32 %v143, %v147
    %v150 = vadd.f32 %v144, %v148
    %s151 = sld [smem:[#allocation4 + $0x80]]
    %v152 = vstv %s151
    %v153 = vmul.f32 %v152, %v70
    %v154 = vmul.f32 %v152, %v71
    %v155 = vadd.f32 %v149, %v153
    %v156 = vadd.f32 %v150, %v154
    %s157 = sld [smem:[#allocation4 + $0x81]]
    %v158 = vstv %s157
    %v159 = vmul.f32 %v158, %v73
    %v160 = vmul.f32 %v158, %v74
    %v161 = vadd.f32 %v155, %v159
    %v162 = vadd.f32 %v156, %v160
    %s163 = sld [smem:[#allocation4 + $0x82]]
    %v164 = vstv %s163
    %v165 = vmul.f32 %v164, %v76
    %v166 = vmul.f32 %v164, %v77
    %v167 = vadd.f32 %v161, %v165
    %v168 = vadd.f32 %v162, %v166
    %s169 = sld [smem:[#allocation4 + $0x83]]
    %v170 = vstv %s169
    %v171 = vmul.f32 %v170, %v79
    %v172 = vmul.f32 %v170, %v80
    %v173 = vadd.f32 %v167, %v171
    %v174 = vadd.f32 %v168, %v172
    %v175 = vmax.f32 %v173, 0.0
    %v176 = vmax.f32 %v174, 0.0
    %s177 = sld [smem:[#allocation2 + $0x100]]
    %v178 = vstv %s177
    %v179 = vmul.f32 %v178, %v56
    %v180 = vmul.f32 %v178, %v57
    %s181 = sld [smem:[#allocation2 + $0x101]]
    %v182 = vstv %s181
    %v183 = vmul.f32 %v182, %v60
    %v184 = vmul.f32 %v182, %v61
    %v185 = vadd.f32 %v179, %v183
    %v186 = vadd.f32 %v180, %v184
    %s187 = sld [smem:[#allocation2 + $0x102]]
    %v188 = vstv %s187
    %v189 = vmul.f32 %v188, %v64
    %v190 = vmul.f32 %v188, %v65
    %v191 = vadd.f32 %v185, %v189
    %v192 = vadd.f32 %v186, %v190
    %s193 = sld [smem:[#allocation2 + $0x103]]
    %v194 = vstv %s193
    %v195 = vmul.f32 %v194, %v68
    %v196 = vmul.f32 %v194, %v69
    %v197 = vadd.f32 %v191, %v195
    %v198 = vadd.f32 %v192, %v196
    %s199 = sld [smem:[#allocation4 + $0x100]]
    %v200 = vstv %s199
    %v201 = vmul.f32 %v200, %v70
    %v202 = vmul.f32 %v200, %v71
    %v203 = vadd.f32 %v197, %v201
    %v204 = vadd.f32 %v198, %v202
    %s205 = sld [smem:[#allocation4 + $0x101]]
    %v206 = vstv %s205
    %v207 = vmul.f32 %v206, %v73
    %v208 = vmul.f32 %v206, %v74
    %v209 = vadd.f32 %v203, %v207
    %v210 = vadd.f32 %v204, %v208
    %s211 = sld [smem:[#allocation4 + $0x102]]
    %v212 = vstv %s211
    %v213 = vmul.f32 %v212, %v76
    %v214 = vmul.f32 %v212, %v77
    %v215 = vadd.f32 %v209, %v213
    %v216 = vadd.f32 %v210, %v214
    %s217 = sld [smem:[#allocation4 + $0x103]]
    %v218 = vstv %s217
    %v219 = vmul.f32 %v218, %v79
    %v220 = vmul.f32 %v218, %v80
    %v221 = vadd.f32 %v215, %v219
    %v222 = vadd.f32 %v216, %v220
    %v223 = vmax.f32 %v221, 0.0
    %v224 = vmax.f32 %v222, 0.0
    %s225 = sld [smem:[#allocation2 + $0x180]]
    %v226 = vstv %s225
    %v227 = vmul.f32 %v226, %v56
    %v228 = vmul.f32 %v226, %v57
    %s229 = sld [smem:[#allocation2 + $0x181]]
    %v230 = vstv %s229
    %v231 = vmul.f32 %v230, %v60
    %v232 = vmul.f32 %v230, %v61
    %v233 = vadd.f32 %v227, %v231
    %v234 = vadd.f32 %v228, %v232
    %s235 = sld [smem:[#allocation2 + $0x182]]
    %v236 = vstv %s235
    %v237 = vmul.f32 %v236, %v64
    %v238 = vmul.f32 %v236, %v65
    %v239 = vadd.f32 %v233, %v237
    %v240 = vadd.f32 %v234, %v238
    %s241 = sld [smem:[#allocation2 + $0x183]]
    %v242 = vstv %s241
    %v243 = vmul.f32 %v242, %v68
    %v244 = vmul.f32 %v242, %v69
    %v245 = vadd.f32 %v239, %v243
    %v246 = vadd.f32 %v240, %v244
    %s247 = sld [smem:[#allocation4 + $0x180]]
    %v248 = vstv %s247
    %v249 = vmul.f32 %v248, %v70
    %v250 = vmul.f32 %v248, %v71
    %v251 = vadd.f32 %v245, %v249
    %v252 = vadd.f32 %v246, %v250
    %s253 = sld [smem:[#allocation4 + $0x181]]
    %v254 = vstv %s253
    %v255 = vmul.f32 %v254, %v73
    %v256 = vmul.f32 %v254, %v74
    %v257 = vadd.f32 %v251, %v255
    %v258 = vadd.f32 %v252, %v256
    %s259 = sld [smem:[#allocation4 + $0x182]]
    %v260 = vstv %s259
    %v261 = vmul.f32 %v260, %v76
    %v262 = vmul.f32 %v260, %v77
    %v263 = vadd.f32 %v257, %v261
    %v264 = vadd.f32 %v258, %v262
    %s265 = sld [smem:[#allocation4 + $0x183]]
    %v266 = vstv %s265
    %v267 = vmul.f32 %v266, %v79
    %v268 = vmul.f32 %v266, %v80
    %v269 = vadd.f32 %v263, %v267
    %v270 = vadd.f32 %v264, %v268
    %v271 = vmax.f32 %v269, 0.0
    %v272 = vmax.f32 %v270, 0.0
    %s273 = sld [smem:[#allocation6]]
    %v274 = vstv %s273
    %v275 = vmul.f32 %v274, %v127
    %v276 = vmul.f32 %v274, %v128
    %s277 = sld [smem:[#allocation6 + $0x1]]
    %v278 = vstv %s277
    %v279 = vmul.f32 %v278, %v175
    %v280 = vmul.f32 %v278, %v176
    %v281 = vadd.f32 %v275, %v279
    %v282 = vadd.f32 %v276, %v280
    %s283 = sld [smem:[#allocation6 + $0x2]]
    %v284 = vstv %s283
    %v285 = vmul.f32 %v284, %v223
    %v286 = vmul.f32 %v284, %v224
    %v287 = vadd.f32 %v281, %v285
    %v288 = vadd.f32 %v282, %v286
    %s289 = sld [smem:[#allocation6 + $0x3]]
    %v290 = vstv %s289
    %v291 = vmul.f32 %v290, %v271
    %v292 = vmul.f32 %v290, %v272
    %v293 = vadd.f32 %v287, %v291
    %v294 = vadd.f32 %v288, %v292
    %v295 = vxor.u32 %v293, 2147483648
    %v296 = vxor.u32 %v294, 2147483648
    %v297 = vmul.f32 %v295, 1.442695
    %v298 = vpow.pop %v297
    %v299 = vmul.f32 %v296, 1.442695
    %v300 = vpow.pop %v299
    %v301 = vadd.f32 %v298, 1.0
    %v302 = vadd.f32 %v300, 1.0
    %v303 = vrcp.pop %v301
    %v304 = vmul.f32 %v301, %v303
    %v305 = vsub.f32 1.0, %v304
    %v306 = vmul.f32 %v303, %v305
    %v307 = vadd.f32 %v303, %v306
    %vm308 = vweird.f32 %v301
    %vm309 = vweird.f32 %v303
    %vm310 = vmor %vm308, %vm309
    %v311 = vsel %vm310, %v303, %v307
    %v312 = vand.u32 2147483647, %v301
    %vm313 = vcmp.eq.f32.partialorder %v312, 8.507059e+37
    %v314 = vand.u32 %v301, 2147483648
    %v315 = vor.u32 1.1754944e-38, %v314
    %v316 = vsel %vm313, %v315, %v311
    %v317 = vmul.f32 1.0, %v316
    %v318 = vrcp.pop %v302
    %v319 = vmul.f32 %v302, %v318
    %v320 = vsub.f32 1.0, %v319
    %v321 = vmul.f32 %v318, %v320
    %v322 = vadd.f32 %v318, %v321
    %vm323 = vweird.f32 %v302
    %vm324 = vweird.f32 %v318
    %vm325 = vmor %vm323, %vm324
    %v326 = vsel %vm325, %v318, %v322
    %v327 = vand.u32 2147483647, %v302
    %vm328 = vcmp.eq.f32.partialorder %v327, 8.507059e+37
    %v329 = vand.u32 %v302, 2147483648
    %v330 = vor.u32 1.1754944e-38, %v329
    %v331 = vsel %vm328, %v330, %v326
    %v332 = vmul.f32 1.0, %v331
    %v333 = vmul.f32 %v56, %v317
    %v334 = vmul.f32 %v57, %v332
    %335 = vst [vmem:[%s5] sm:$0x3] %v333
    %336 = vst [vmem:[%s5 + $0x8] sm:$0x3] %v334
    %s337 = sld [smem:[#allocation6 + $0x80]]
    %v338 = vstv %s337
    %v339 = vmul.f32 %v338, %v127
    %v340 = vmul.f32 %v338, %v128
    %s341 = sld [smem:[#allocation6 + $0x81]]
    %v342 = vstv %s341
    %v343 = vmul.f32 %v342, %v175
    %v344 = vmul.f32 %v342, %v176
    %v345 = vadd.f32 %v339, %v343
    %v346 = vadd.f32 %v340, %v344
    %s347 = sld [smem:[#allocation6 + $0x82]]
    %v348 = vstv %s347
    %v349 = vmul.f32 %v348, %v223
    %v350 = vmul.f32 %v348, %v224
    %v351 = vadd.f32 %v345, %v349
    %v352 = vadd.f32 %v346, %v350
    %s353 = sld [smem:[#allocation6 + $0x83]]
    %v354 = vstv %s353
    %v355 = vmul.f32 %v354, %v271
    %v356 = vmul.f32 %v354, %v272
    %v357 = vadd.f32 %v351, %v355
    %v358 = vadd.f32 %v352, %v356
    %v359 = vxor.u32 %v357, 2147483648
    %v360 = vxor.u32 %v358, 2147483648
    %v361 = vmul.f32 %v359, 1.442695
    %v362 = vpow.pop %v361
    %v363 = vmul.f32 %v360, 1.442695
    %v364 = vpow.pop %v363
    %v365 = vadd.f32 %v362, 1.0
    %v366 = vadd.f32 %v364, 1.0
    %v367 = vrcp.pop %v365
    %v368 = vmul.f32 %v365, %v367
    %v369 = vsub.f32 1.0, %v368
    %v370 = vmul.f32 %v367, %v369
    %v371 = vadd.f32 %v367, %v370
    %vm372 = vweird.f32 %v365
    %vm373 = vweird.f32 %v367
    %vm374 = vmor %vm372, %vm373
    %v375 = vsel %vm374, %v367, %v371
    %v376 = vand.u32 2147483647, %v365
    %vm377 = vcmp.eq.f32.partialorder %v376, 8.507059e+37
    %v378 = vand.u32 %v365, 2147483648
    %v379 = vor.u32 1.1754944e-38, %v378
    %v380 = vsel %vm377, %v379, %v375
    %v381 = vmul.f32 1.0, %v380
    %v382 = vrcp.pop %v366
    %v383 = vmul.f32 %v366, %v382
    %v384 = vsub.f32 1.0, %v383
    %v385 = vmul.f32 %v382, %v384
    %v386 = vadd.f32 %v382, %v385
    %vm387 = vweird.f32 %v366
    %vm388 = vweird.f32 %v382
    %vm389 = vmor %vm387, %vm388
    %v390 = vsel %vm389, %v382, %v386
    %v391 = vand.u32 2147483647, %v366
    %vm392 = vcmp.eq.f32.partialorder %v391, 8.507059e+37
    %v393 = vand.u32 %v366, 2147483648
    %v394 = vor.u32 1.1754944e-38, %v393
    %v395 = vsel %vm392, %v394, %v390
    %v396 = vmul.f32 1.0, %v395
    %v397 = vmul.f32 %v60, %v381
    %v398 = vmul.f32 %v61, %v396
    %s399 = scalar_lea.vmem %s5, %s58
    %400 = vst [vmem:[%s399] sm:$0x3] %v397
    %401 = vst [vmem:[%s399 + $0x8] sm:$0x3] %v398
    %s402 = sld [smem:[#allocation6 + $0x100]]
    %v403 = vstv %s402
    %v404 = vmul.f32 %v403, %v127
    %v405 = vmul.f32 %v403, %v128
    %s406 = sld [smem:[#allocation6 + $0x101]]
    %v407 = vstv %s406
    %v408 = vmul.f32 %v407, %v175
    %v409 = vmul.f32 %v407, %v176
    %v410 = vadd.f32 %v404, %v408
    %v411 = vadd.f32 %v405, %v409
    %s412 = sld [smem:[#allocation6 + $0x102]]
    %v413 = vstv %s412
    %v414 = vmul.f32 %v413, %v223
    %v415 = vmul.f32 %v413, %v224
    %v416 = vadd.f32 %v410, %v414
    %v417 = vadd.f32 %v411, %v415
    %s418 = sld [smem:[#allocation6 + $0x103]]
    %v419 = vstv %s418
    %v420 = vmul.f32 %v419, %v271
    %v421 = vmul.f32 %v419, %v272
    %v422 = vadd.f32 %v416, %v420
    %v423 = vadd.f32 %v417, %v421
    %v424 = vxor.u32 %v422, 2147483648
    %v425 = vxor.u32 %v423, 2147483648
    %v426 = vmul.f32 %v424, 1.442695
    %v427 = vpow.pop %v426
    %v428 = vmul.f32 %v425, 1.442695
    %v429 = vpow.pop %v428
    %v430 = vadd.f32 %v427, 1.0
    %v431 = vadd.f32 %v429, 1.0
    %v432 = vrcp.pop %v430
    %v433 = vmul.f32 %v430, %v432
    %v434 = vsub.f32 1.0, %v433
    %v435 = vmul.f32 %v432, %v434
    %v436 = vadd.f32 %v432, %v435
    %vm437 = vweird.f32 %v430
    %vm438 = vweird.f32 %v432
    %vm439 = vmor %vm437, %vm438
    %v440 = vsel %vm439, %v432, %v436
    %v441 = vand.u32 2147483647, %v430
    %vm442 = vcmp.eq.f32.partialorder %v441, 8.507059e+37
    %v443 = vand.u32 %v430, 2147483648
    %v444 = vor.u32 1.1754944e-38, %v443
    %v445 = vsel %vm442, %v444, %v440
    %v446 = vmul.f32 1.0, %v445
    %v447 = vrcp.pop %v431
    %v448 = vmul.f32 %v431, %v447
    %v449 = vsub.f32 1.0, %v448
    %v450 = vmul.f32 %v447, %v449
    %v451 = vadd.f32 %v447, %v450
    %vm452 = vweird.f32 %v431
    %vm453 = vweird.f32 %v447
    %vm454 = vmor %vm452, %vm453
    %v455 = vsel %vm454, %v447, %v451
    %v456 = vand.u32 2147483647, %v431
    %vm457 = vcmp.eq.f32.partialorder %v456, 8.507059e+37
    %v458 = vand.u32 %v431, 2147483648
    %v459 = vor.u32 1.1754944e-38, %v458
    %v460 = vsel %vm457, %v459, %v455
    %v461 = vmul.f32 1.0, %v460
    %v462 = vmul.f32 %v64, %v446
    %v463 = vmul.f32 %v65, %v461
    %s464 = scalar_lea.vmem %s5, %s62
    %465 = vst [vmem:[%s464] sm:$0x3] %v462
    %466 = vst [vmem:[%s464 + $0x8] sm:$0x3] %v463
    %s467 = sld [smem:[#allocation6 + $0x180]]
    %v468 = vstv %s467
    %v469 = vmul.f32 %v468, %v127
    %v470 = vmul.f32 %v468, %v128
    %s471 = sld [smem:[#allocation6 + $0x181]]
    %v472 = vstv %s471
    %v473 = vmul.f32 %v472, %v175
    %v474 = vmul.f32 %v472, %v176
    %v475 = vadd.f32 %v469, %v473
    %v476 = vadd.f32 %v470, %v474
    %s477 = sld [smem:[#allocation6 + $0x182]]
    %v478 = vstv %s477
    %v479 = vmul.f32 %v478, %v223
    %v480 = vmul.f32 %v478, %v224
    %v481 = vadd.f32 %v475, %v479
    %v482 = vadd.f32 %v476, %v480
    %s483 = sld [smem:[#allocation6 + $0x183]]
    %v484 = vstv %s483
    %v485 = vmul.f32 %v484, %v271
    %v486 = vmul.f32 %v484, %v272
    %v487 = vadd.f32 %v481, %v485
    %v488 = vadd.f32 %v482, %v486
    %v489 = vxor.u32 %v487, 2147483648
    %v490 = vxor.u32 %v488, 2147483648
    %v491 = vmul.f32 %v489, 1.442695
    %v492 = vpow.pop %v491
    %v493 = vmul.f32 %v490, 1.442695
    %v494 = vpow.pop %v493
    %v495 = vadd.f32 %v492, 1.0
    %v496 = vadd.f32 %v494, 1.0
    %v497 = vrcp.pop %v495
    %v498 = vmul.f32 %v495, %v497
    %v499 = vsub.f32 1.0, %v498
    %v500 = vmul.f32 %v497, %v499
    %v501 = vadd.f32 %v497, %v500
    %vm502 = vweird.f32 %v495
    %vm503 = vweird.f32 %v497
    %vm504 = vmor %vm502, %vm503
    %v505 = vsel %vm504, %v497, %v501
    %v506 = vand.u32 2147483647, %v495
    %vm507 = vcmp.eq.f32.partialorder %v506, 8.507059e+37
    %v508 = vand.u32 %v495, 2147483648
    %v509 = vor.u32 1.1754944e-38, %v508
    %v510 = vsel %vm507, %v509, %v505
    %v511 = vmul.f32 1.0, %v510
    %v512 = vrcp.pop %v496
    %v513 = vmul.f32 %v496, %v512
    %v514 = vsub.f32 1.0, %v513
    %v515 = vmul.f32 %v512, %v514
    %v516 = vadd.f32 %v512, %v515
    %vm517 = vweird.f32 %v496
    %vm518 = vweird.f32 %v512
    %vm519 = vmor %vm517, %vm518
    %v520 = vsel %vm519, %v512, %v516
    %v521 = vand.u32 2147483647, %v496
    %vm522 = vcmp.eq.f32.partialorder %v521, 8.507059e+37
    %v523 = vand.u32 %v496, 2147483648
    %v524 = vor.u32 1.1754944e-38, %v523
    %v525 = vsel %vm522, %v524, %v520
    %v526 = vmul.f32 1.0, %v525
    %v527 = vmul.f32 %v68, %v511
    %v528 = vmul.f32 %v69, %v526
    %s529 = scalar_lea.vmem %s5, %s66
    %530 = vst [vmem:[%s529] sm:$0x3] %v527
    %531 = vst [vmem:[%s529 + $0x8] sm:$0x3] %v528
    // Predicated region
    $region34: #{attention_gate.1} parent=1 // pred_check
      _
    $region35: #{attention_gate.1} parent=1 // pred_check_branch
      %533 = sbr.rel (0) target = $region37
    $region36: #{attention_gate.1} parent=1 // pred_region
      _
    $region37: #{attention_gate.1} parent=1 // pred_fallthru
      _
    // Predicated region
    $region38: #{attention_gate.1} parent=1 // pred_check
      _
    $region39: #{attention_gate.1} parent=1 // pred_check_branch
      %535 = sbr.rel (0) target = $region41
    $region40: #{attention_gate.1} parent=1 // pred_region
      _
    $region41: #{attention_gate.1} parent=1 // pred_fallthru
      _
    %536 = vsyncpa [#allocation3], 1
    %537 = vsyncpa [#allocation5], 1

</llo_original>
